<compile_context>
chip_gen: v6e
topology: v6e:2x2x1
jax: 0.10.0
libtpu: 0.0.40
codegen_flags: <defaults>
</compile_context>

<pallas_src>
import functools

import jax
import jax.numpy as jnp
import numpy as np
from jax.experimental import pallas as pl
from jax.experimental.pallas import tpu as pltpu


# ----------------------------------------------------------------------------
# small static helpers
# ----------------------------------------------------------------------------
def _round_up(x, m):
    return (x + m - 1) // m * m


def _cdiv(a, b):
    return -(-a // b)


def _pick_halo_block(ht, halo):
    """Smallest divisor of `ht` that is >= halo (halo block stays block-aligned).

    Callers guarantee ht >= halo, so this always succeeds (ht divides ht)."""
    for cand in range(max(halo, 1), ht + 1):
        if ht % cand == 0:
            return cand
    return ht


def _tpu_caps():
    """(vmem_capacity_bytes, has_256_wide_mxu) with safe fallbacks."""
    cap = 64 << 20  # conservative (v7x per-TC capacity)
    try:
        cap = int(pltpu.get_tpu_info().vmem_capacity_bytes)
    except Exception:
        pass
    wide_mxu = False
    try:
        kind = jax.devices()[0].device_kind.lower()
        # v2..v5 have 128-wide MXUs; v6e / v7x have 2x256x256 MXUs.
        wide_mxu = not any(s in kind for s in ("v2", "v3", "v4", "v5"))
    except Exception:
        wide_mxu = False
    return cap, wide_mxu


# ----------------------------------------------------------------------------
# Fused kernel: conv tile (im2col OR tap-accumulation) + BN-stats epilogue
# ----------------------------------------------------------------------------
def conv_bn_stats_kernel(xa_ref, xh_ref, w_ref, y_ref, s_ref, q_ref, *scratch,
                         kh_size, kw_size, dilation, halo, use_im2col):
    # xa_ref : (1, Ht, Wp, Cin)   rows [t*Ht, t*Ht+Ht) of the padded image
    # xh_ref : (1, hb, Wp, Cin)   halo rows below the tile (hb >= halo)
    # w_ref  : (KH*KW*Cin, Ct)    im2col-ordered weights for this Cout tile
    # y_ref  : (1, Ht, Wo, Ct)    conv output tile (bf16 by default)
    # s_ref  : (1, Ht, Ct)        per-output-row channel sums   (BN partials)
    # q_ref  : (1, Ht, Ct)        per-output-row channel sums of squares
    # scratch: [acc_ref (Ht*Wo, Ct) f32]  only in the tap-accumulation path
    _, ht, wp, cin = xa_ref.shape
    _, _, wo, ct = y_ref.shape

    xa = xa_ref[0]
    if halo > 0:
        xwin = jnp.concatenate([xa, xh_ref[0, :halo]], axis=0)   # (Ht+halo, Wp, Cin)
    else:
        xwin = xa

    if use_im2col:
        # Small K*Cin: pack the KH*KW shifted taps along the lane axis so the
        # whole tile is ONE MXU matmul with contraction K = KH*KW*Cin.
        taps = []
        for kh in range(kh_size):
            for kw in range(kw_size):
                taps.append(xwin[kh * dilation: kh * dilation + ht,
                                 kw * dilation: kw * dilation + wo, :])
        patch = taps[0] if len(taps) == 1 else jnp.concatenate(taps, axis=-1)
        patch = patch.reshape(ht * wo, kh_size * kw_size * cin)
        acc = jnp.dot(patch, w_ref[...], preferred_element_type=jnp.float32)
    else:
        # Large Cin: per-tap matmuls (K=Cin) accumulated into an f32 VMEM
        # scratch -- avoids the Ht*Wo*KH*KW*Cin im2col intermediate that blows
        # VMEM (v7x: 64 MiB) and saturates the store slot.
        acc_ref = scratch[0]
        tap_i = 0
        for kh in range(kh_size):
            for kw in range(kw_size):
                tap = xwin[kh * dilation: kh * dilation + ht,
                           kw * dilation: kw * dilation + wo, :]
                tap2d = tap.reshape(ht * wo, cin)
                part = jnp.dot(tap2d, w_ref[pl.ds(tap_i * cin, cin), :],
                               preferred_element_type=jnp.float32)
                if tap_i == 0:
                    acc_ref[...] = part
                else:
                    acc_ref[...] += part
                tap_i += 1
        acc = acc_ref[...]

    y = acc.reshape(ht, wo, ct)                     # f32
    y_ref[0] = y.astype(y_ref.dtype)                # bf16 intermediate to HBM
    # BN statistics epilogue from the f32 accumulator (W reduced here; the tiny
    # (N*Ho, Cout) partials are reduced by one jnp.sum in the wrapper).  Partial
    # per-tile outputs keep every grid axis "parallel" (v7x megacore-friendly).
    s_ref[0] = jnp.sum(y, axis=1)
    q_ref[0] = jnp.sum(y * y, axis=1)


# ----------------------------------------------------------------------------
# Wrapper reproducing Conv2D.forward (NCHW in, NCHW out)
# ----------------------------------------------------------------------------
def conv2d_block(x_nchw, weight_oihw, gamma, beta, *, padding=1, dilation=1,
                 eps=1e-5, act=True, block_h=32, block_cout=None,
                 compute_dtype=jnp.bfloat16, conv_store_dtype=jnp.bfloat16):
    N, Cin, H, W = x_nchw.shape
    Cout, _, KH, KW = weight_oihw.shape
    K2 = KH * KW
    halo_h = dilation * (KH - 1)
    halo_w = dilation * (KW - 1)
    Ho = H + 2 * padding - halo_h
    Wo = W + 2 * padding - halo_w
    assert Ho > 0 and Wo > 0, "conv output is empty"

    # ---- device-aware tile choices ------------------------------------------
    vmem_cap, wide_mxu = _tpu_caps()
    if block_cout is None:
        block_cout = 256 if wide_mxu else 128       # match MXU width
    Cout_pad = _round_up(Cout, 128)                 # lane-dense output channels
    Ct = block_cout if (Cout_pad % block_cout == 0) else 128
    Ct = min(Ct, Cout_pad)
    n_ct = Cout_pad // Ct

    # H tiling: no divisibility requirement.  Ht >= halo_h guarantees the halo
    # block (which must divide Ht) always covers the dilated receptive field
    # (ASPP dilations 6/12/18 are safe).
    Ht = min(block_h, _round_up(Ho, 8))
    Ht = _round_up(max(Ht, halo_h, 8), 8)
    n_ht = _cdiv(Ho, Ht)
    Ho_pad = n_ht * Ht                              # tail rows masked later
    hb = _pick_halo_block(Ht, halo_h)
    hm = Ht // hb                                   # halo block-index multiplier

    use_im2col = (K2 * Cin) <= 512

    # ---- layout plumbing (fuses into one XLA pass: transpose + cast + pad) --
    x = jnp.transpose(x_nchw, (0, 2, 3, 1)).astype(compute_dtype)    # NHWC
    Hp = Ho_pad + hb                                # rows so every block fetch is in-bounds
    pad_bottom = Hp - H - padding
    xp = jnp.pad(x, ((0, 0), (padding, pad_bottom), (padding, padding), (0, 0)))
    Wp = W + 2 * padding
    # TODO(synk): the zero-pad could be folded into the kernel with boundary
    # masking to save one input pass on large early layers; kept here because it
    # fuses with the NCHW->NHWC transpose/cast that is needed anyway.

    w = jnp.transpose(weight_oihw, (2, 3, 1, 0)).reshape(K2 * Cin, Cout)
    w = jnp.pad(w, ((0, 0), (0, Cout_pad - Cout))).astype(compute_dtype)

    # Cout-tile axis innermost: the big activation tile's block index is
    # constant across consecutive grid steps, so Pallas does not re-DMA it.
    grid = (N, n_ht, n_ct)

    # ---- VMEM budget (double-buffered BlockSpec I/O + in-kernel temporaries),
    #      capped at 75% of physical VMEM (v7x: 64 MiB per TensorCore). --------
    bpe = jnp.dtype(compute_dtype).itemsize
    ype = jnp.dtype(conv_store_dtype).itemsize
    in_bytes = (Ht * Wp * Cin + hb * Wp * Cin + K2 * Cin * Ct) * bpe
    out_bytes = Ht * Wo * Ct * ype + 2 * Ht * Ct * 4
    if use_im2col:
        scratch_shapes = []
        interm = Ht * Wo * K2 * Cin * bpe * 2 + Ht * Wo * Ct * 4
        scratch_bytes = 0
    else:
        scratch_shapes = [pltpu.VMEM((Ht * Wo, Ct), jnp.float32)]
        interm = Ht * Wo * Cin * bpe * 2 + Ht * Wo * Ct * 4
        scratch_bytes = Ht * Wo * Ct * 4
    interm += (Ht + hb) * Wp * Cin * bpe            # xwin concat
    need = 2 * (in_bytes + out_bytes) + scratch_bytes + interm + (2 << 20)
    vmem_limit = int(min(int(0.75 * vmem_cap), max(32 << 20, need)))

    conv_out, psum, psq = pl.pallas_call(
        functools.partial(conv_bn_stats_kernel, kh_size=KH, kw_size=KW,
                          dilation=dilation, halo=halo_h, use_im2col=use_im2col),
        grid=grid,
        in_specs=[
            pl.BlockSpec((1, Ht, Wp, Cin), lambda n, t, c: (n, t, 0, 0)),
            pl.BlockSpec((1, hb, Wp, Cin), lambda n, t, c: (n, (t + 1) * hm, 0, 0)),
            pl.BlockSpec((K2 * Cin, Ct), lambda n, t, c: (0, c)),
        ],
        out_specs=(
            pl.BlockSpec((1, Ht, Wo, Ct), lambda n, t, c: (n, t, 0, c)),
            pl.BlockSpec((1, Ht, Ct), lambda n, t, c: (n, t, c)),
            pl.BlockSpec((1, Ht, Ct), lambda n, t, c: (n, t, c)),
        ),
        out_shape=(
            jax.ShapeDtypeStruct((N, Ho_pad, Wo, Cout_pad), conv_store_dtype),
            jax.ShapeDtypeStruct((N, Ho_pad, Cout_pad), jnp.float32),
            jax.ShapeDtypeStruct((N, Ho_pad, Cout_pad), jnp.float32),
        ),
        scratch_shapes=scratch_shapes,
        compiler_params=pltpu.CompilerParams(
            # All writes are disjoint -> every axis parallel.  For the common
            # N=1 inference case on v7x, n_ht (>= 2 for real images) is the axis
            # the megacore shards.
            dimension_semantics=("parallel", "parallel", "parallel"),
            vmem_limit_bytes=vmem_limit),
    )(xp, xp, w)

    # ---- BatchNorm statistics finalize (tiny (N, Ho, Cout) f32 partials). ----
    # Padded tail rows (Ho..Ho_pad) and padded channels are excluded.
    # Note: E[x^2]-E[x]^2 in f32 is adequate for conv+BN activations; switch to
    # a centered second pass if tighter BN numerics are ever required.
    count = jnp.float32(N * Ho * Wo)
    mean = jnp.sum(psum[:, :Ho, :Cout], axis=(0, 1)) / count
    var = jnp.maximum(jnp.sum(psq[:, :Ho, :Cout], axis=(0, 1)) / count - mean * mean, 0.0)
    scale = gamma.astype(jnp.float32) * jax.lax.rsqrt(var + eps)
    shift = beta.astype(jnp.float32) - mean * scale

    # ---- BN affine + ReLU + slice + NCHW transpose: left to XLA, which fuses
    #      it into the layout transform it performs anyway (one HBM pass). -----
    y = conv_out[:, :Ho, :, :Cout].astype(jnp.float32)
    y = y * scale.reshape(1, 1, 1, Cout) + shift.reshape(1, 1, 1, Cout)
    if act:
        y = jnp.maximum(y, 0.0)
    return jnp.transpose(y, (0, 3, 1, 2))           # back to NCHW, f32


# ----------------------------------------------------------------------------
# Pure-JAX reference for correctness checking.
# ----------------------------------------------------------------------------
def reference(x_nchw, weight_oihw, gamma, beta, *, padding=1, dilation=1,
              eps=1e-5, act=True, conv_round_dtype=None):
    conv = jax.lax.conv_general_dilated(
        x_nchw.astype(jnp.float32), weight_oihw.astype(jnp.float32),
        window_strides=(1, 1),
        padding=((padding, padding), (padding, padding)),
        rhs_dilation=(dilation, dilation),
        dimension_numbers=('NCHW', 'OIHW', 'NCHW'),
        precision=jax.lax.Precision.HIGHEST)
    mean = jnp.mean(conv, axis=(0, 2, 3), keepdims=True)
    var = jnp.mean((conv - mean) ** 2, axis=(0, 2, 3), keepdims=True)
    if conv_round_dtype is not None:
        # mimic the kernel's stored intermediate (stats stay f32)
        conv = conv.astype(conv_round_dtype).astype(jnp.float32)
    scale = gamma.reshape(1, -1, 1, 1) / jnp.sqrt(var + eps)
    y = (conv - mean) * scale + beta.reshape(1, -1, 1, 1)
    if act:
        y = jnp.maximum(y, 0.0)
    return y


if __name__ == "__main__":
    key = jax.random.PRNGKey(0)
    k_x, k_w, k_g, k_b, k_x2, k_w2, k_g2, k_b2 = jax.random.split(key, 8)

    # ---------------- Case 1: module-default small shapes ---------------------
    # Exercises the im2col path, H tiling (2 tiles) + halo, dilation=1.
    N, Cin, Cout, H, W, K = 2, 4, 8, 16, 16, 3
    x = jax.random.normal(k_x, (N, Cin, H, W), jnp.float32)
    bound = 1.0 / np.sqrt(Cin * K * K)
    weight = jax.random.uniform(k_w, (Cout, Cin, K, K), jnp.float32, -bound, bound)
    gamma = 1.0 + 0.1 * jax.random.normal(k_g, (Cout,), jnp.float32)
    beta = 0.1 * jax.random.normal(k_b, (Cout,), jnp.float32)

    xb = x.astype(jnp.bfloat16).astype(jnp.float32)
    wb = weight.astype(jnp.bfloat16).astype(jnp.float32)

    # 1a: f32 intermediate -> tight check of the conv/BN pipeline math.
    fn_f32 = jax.jit(functools.partial(conv2d_block, padding=1, dilation=1,
                                       act=True, block_h=8,
                                       conv_store_dtype=jnp.float32))
    out_f32 = jax.block_until_ready(fn_f32(x, weight, gamma, beta))
    ref_tight = reference(xb, wb, gamma, beta, padding=1, dilation=1, act=True)
    np.testing.assert_allclose(np.asarray(out_f32), np.asarray(ref_tight),
                               rtol=1e-3, atol=1e-3)

    # 1b: production path (bf16 intermediate) -> matched-rounding reference.
    fn = jax.jit(functools.partial(conv2d_block, padding=1, dilation=1,
                                   act=True, block_h=8))
    out = jax.block_until_ready(fn(x, weight, gamma, beta))
    ref_b = reference(xb, wb, gamma, beta, padding=1, dilation=1, act=True,
                      conv_round_dtype=jnp.bfloat16)
    np.testing.assert_allclose(np.asarray(out), np.asarray(ref_b),
                               rtol=1e-2, atol=1e-2)
    ref_f = reference(x, weight, gamma, beta, padding=1, dilation=1, act=True)
    np.testing.assert_allclose(np.asarray(out), np.asarray(ref_f),
                               rtol=1e-1, atol=1e-1)

    # ---------------- Case 2: ASPP-style dilated conv, bigger channels --------
    # Exercises the tap-accumulation path (KH*KW*Cin > 512), dilation=2 halo,
    # non-multiple-of-8 output height (tail-row masking) and Cout tiling.
    N2, Cin2, Cout2, H2, W2 = 1, 128, 192, 15, 15
    x2 = jax.random.normal(k_x2, (N2, Cin2, H2, W2), jnp.float32)
    bound2 = 1.0 / np.sqrt(Cin2 * K * K)
    w2 = jax.random.uniform(k_w2, (Cout2, Cin2, K, K), jnp.float32, -bound2, bound2)
    g2 = 1.0 + 0.1 * jax.random.normal(k_g2, (Cout2,), jnp.float32)
    b2 = 0.1 * jax.random.normal(k_b2, (Cout2,), jnp.float32)

    fn2 = jax.jit(functools.partial(conv2d_block, padding=2, dilation=2, act=True))
    out2 = jax.block_until_ready(fn2(x2, w2, g2, b2))
    x2b = x2.astype(jnp.bfloat16).astype(jnp.float32)
    w2b = w2.astype(jnp.bfloat16).astype(jnp.float32)
    ref2 = reference(x2b, w2b, g2, b2, padding=2, dilation=2, act=True,
                     conv_round_dtype=jnp.bfloat16)
    np.testing.assert_allclose(np.asarray(out2), np.asarray(ref2),
                               rtol=1e-2, atol=1e-2)

    print("KERNEL_OK")
</pallas_src>

<mosaic_0001>
module attributes {stable_mosaic.version = 11 : i64} {
  func.func @conv_bn_stats_kernel(%arg0: i32, %arg1: i32, %arg2: i32, %arg3: memref<1x8x18x4xbf16, #tpu.memory_space<vmem>>, %arg4: memref<1x2x18x4xbf16, #tpu.memory_space<vmem>>, %arg5: memref<36x128xbf16, #tpu.memory_space<vmem>>, %arg6: memref<1x8x16x128xf32, #tpu.memory_space<vmem>>, %arg7: memref<1x8x128xf32, #tpu.memory_space<vmem>>, %arg8: memref<1x8x128xf32, #tpu.memory_space<vmem>>) attributes {dimension_semantics = [#tpu.dimension_semantics<parallel>, #tpu.dimension_semantics<parallel>, #tpu.dimension_semantics<parallel>], iteration_bounds = array<i64: 2, 2, 1>, scalar_prefetch = 0 : i64, scratch_operands = 0 : i64, tpu.core_type = #tpu.core_type<tc>, window_params = [{transform_indices = @transform_0, window_bounds = array<i64: 1, 8, 18, 4>}, {transform_indices = @transform_1, window_bounds = array<i64: 1, 2, 18, 4>}, {transform_indices = @transform_2, window_bounds = array<i64: 36, 128>}, {transform_indices = @transform_3, window_bounds = array<i64: 1, 8, 16, 128>}, {transform_indices = @transform_4, window_bounds = array<i64: 1, 8, 128>}, {transform_indices = @transform_5, window_bounds = array<i64: 1, 8, 128>}]} {
    %c0 = arith.constant 0 : index
    %c0_0 = arith.constant 0 : index
    %c0_1 = arith.constant 0 : index
    %c0_2 = arith.constant 0 : index
    %0 = vector.load %arg3[%c0, %c0_0, %c0_1, %c0_2] : memref<1x8x18x4xbf16, #tpu.memory_space<vmem>>, vector<1x8x18x4xbf16>
    %1 = vector.shape_cast %0 : vector<1x8x18x4xbf16> to vector<8x18x4xbf16>
    %c0_3 = arith.constant 0 : index
    %c0_4 = arith.constant 0 : index
    %c0_5 = arith.constant 0 : index
    %c0_6 = arith.constant 0 : index
    %2 = vector.load %arg4[%c0_3, %c0_4, %c0_5, %c0_6] : memref<1x2x18x4xbf16, #tpu.memory_space<vmem>>, vector<1x2x18x4xbf16>
    %3 = vector.shape_cast %2 : vector<1x2x18x4xbf16> to vector<2x18x4xbf16>
    %4 = tpu.concatenate %1, %3 in 0 : vector<8x18x4xbf16>, vector<2x18x4xbf16> -> vector<10x18x4xbf16>
    %5 = vector.extract_strided_slice %4 {offsets = [0, 0, 0], sizes = [8, 16, 4], strides = [1, 1, 1]} : vector<10x18x4xbf16> to vector<8x16x4xbf16>
    %6 = vector.extract_strided_slice %4 {offsets = [0, 1, 0], sizes = [8, 16, 4], strides = [1, 1, 1]} : vector<10x18x4xbf16> to vector<8x16x4xbf16>
    %7 = vector.extract_strided_slice %4 {offsets = [0, 2, 0], sizes = [8, 16, 4], strides = [1, 1, 1]} : vector<10x18x4xbf16> to vector<8x16x4xbf16>
    %8 = vector.extract_strided_slice %4 {offsets = [1, 0, 0], sizes = [8, 16, 4], strides = [1, 1, 1]} : vector<10x18x4xbf16> to vector<8x16x4xbf16>
    %9 = vector.extract_strided_slice %4 {offsets = [1, 1, 0], sizes = [8, 16, 4], strides = [1, 1, 1]} : vector<10x18x4xbf16> to vector<8x16x4xbf16>
    %10 = vector.extract_strided_slice %4 {offsets = [1, 2, 0], sizes = [8, 16, 4], strides = [1, 1, 1]} : vector<10x18x4xbf16> to vector<8x16x4xbf16>
    %11 = vector.extract_strided_slice %4 {offsets = [2, 0, 0], sizes = [8, 16, 4], strides = [1, 1, 1]} : vector<10x18x4xbf16> to vector<8x16x4xbf16>
    %12 = vector.extract_strided_slice %4 {offsets = [2, 1, 0], sizes = [8, 16, 4], strides = [1, 1, 1]} : vector<10x18x4xbf16> to vector<8x16x4xbf16>
    %13 = vector.extract_strided_slice %4 {offsets = [2, 2, 0], sizes = [8, 16, 4], strides = [1, 1, 1]} : vector<10x18x4xbf16> to vector<8x16x4xbf16>
    %14 = tpu.concatenate %5, %6, %7, %8, %9, %10, %11, %12, %13 in 2 : vector<8x16x4xbf16>, vector<8x16x4xbf16>, vector<8x16x4xbf16>, vector<8x16x4xbf16>, vector<8x16x4xbf16>, vector<8x16x4xbf16>, vector<8x16x4xbf16>, vector<8x16x4xbf16>, vector<8x16x4xbf16> -> vector<8x16x36xbf16>
    %15 = vector.shape_cast %14 : vector<8x16x36xbf16> to vector<128x36xbf16>
    %c0_7 = arith.constant 0 : index
    %c0_8 = arith.constant 0 : index
    %16 = vector.load %arg5[%c0_7, %c0_8] : memref<36x128xbf16, #tpu.memory_space<vmem>>, vector<36x128xbf16>
    %cst = arith.constant dense<0.000000e+00> : vector<128x128xf32>
    %17 = tpu.matmul %15, %16, %cst {dimension_numbers = #tpu.dot_dimension_numbers<[1], [0], [0], [1], [0, 0, 1, 1], [], []>} : vector<128x36xbf16>, vector<36x128xbf16>, vector<128x128xf32> -> vector<128x128xf32>
    %18 = vector.shape_cast %17 : vector<128x128xf32> to vector<8x16x128xf32>
    %c0_9 = arith.constant 0 : index
    %c0_10 = arith.constant 0 : index
    %c0_11 = arith.constant 0 : index
    %c0_12 = arith.constant 0 : index
    %19 = vector.load %arg6[%c0_9, %c0_10, %c0_11, %c0_12] : memref<1x8x16x128xf32, #tpu.memory_space<vmem>>, vector<1x8x16x128xf32>
    %20 = vector.shape_cast %19 : vector<1x8x16x128xf32> to vector<8x16x128xf32>
    %21 = vector.shape_cast %18 : vector<8x16x128xf32> to vector<1x8x16x128xf32>
    tpu.vector_store %arg6[%c0_9, %c0_10, %c0_11, %c0_12], %21 {strides = array<i32>} : memref<1x8x16x128xf32, #tpu.memory_space<vmem>>, vector<1x8x16x128xf32>,
    %cst_13 = arith.constant dense<0.000000e+00> : vector<8x128xf32>
    %22 = vector.multi_reduction <add>, %18, %cst_13 [1] : vector<8x16x128xf32> to vector<8x128xf32>
    %c0_14 = arith.constant 0 : index
    %c0_15 = arith.constant 0 : index
    %c0_16 = arith.constant 0 : index
    %23 = vector.load %arg7[%c0_14, %c0_15, %c0_16] : memref<1x8x128xf32, #tpu.memory_space<vmem>>, vector<1x8x128xf32>
    %24 = vector.shape_cast %23 : vector<1x8x128xf32> to vector<8x128xf32>
    %25 = vector.shape_cast %22 : vector<8x128xf32> to vector<1x8x128xf32>
    tpu.vector_store %arg7[%c0_14, %c0_15, %c0_16], %25 {strides = array<i32>} : memref<1x8x128xf32, #tpu.memory_space<vmem>>, vector<1x8x128xf32>,
    %26 = arith.mulf %18, %18 : vector<8x16x128xf32>
    %cst_17 = arith.constant dense<0.000000e+00> : vector<8x128xf32>
    %27 = vector.multi_reduction <add>, %26, %cst_17 [1] : vector<8x16x128xf32> to vector<8x128xf32>
    %c0_18 = arith.constant 0 : index
    %c0_19 = arith.constant 0 : index
    %c0_20 = arith.constant 0 : index
    %28 = vector.load %arg8[%c0_18, %c0_19, %c0_20] : memref<1x8x128xf32, #tpu.memory_space<vmem>>, vector<1x8x128xf32>
    %29 = vector.shape_cast %28 : vector<1x8x128xf32> to vector<8x128xf32>
    %30 = vector.shape_cast %27 : vector<8x128xf32> to vector<1x8x128xf32>
    tpu.vector_store %arg8[%c0_18, %c0_19, %c0_20], %30 {strides = array<i32>} : memref<1x8x128xf32, #tpu.memory_space<vmem>>, vector<1x8x128xf32>,
    return
  }
  func.func @transform_0(%arg0: i32, %arg1: i32, %arg2: i32) -> (i32, i32, i32, i32) {
    %c0_i32 = arith.constant 0 : i32
    %c0_i32_0 = arith.constant 0 : i32
    %c0_i32_1 = arith.constant 0 : i32
    return %arg0, %arg1, %c0_i32, %c0_i32_0 : i32, i32, i32, i32
  }
  func.func @transform_1(%arg0: i32, %arg1: i32, %arg2: i32) -> (i32, i32, i32, i32) {
    %c1_i32 = arith.constant 1 : i32
    %0 = arith.addi %arg1, %c1_i32 : i32
    %c4_i32 = arith.constant 4 : i32
    %1 = arith.muli %0, %c4_i32 : i32
    %c0_i32 = arith.constant 0 : i32
    %c0_i32_0 = arith.constant 0 : i32
    %c0_i32_1 = arith.constant 0 : i32
    return %arg0, %1, %c0_i32, %c0_i32_0 : i32, i32, i32, i32
  }
  func.func @transform_2(%arg0: i32, %arg1: i32, %arg2: i32) -> (i32, i32) {
    %c0_i32 = arith.constant 0 : i32
    %c0_i32_0 = arith.constant 0 : i32
    return %c0_i32, %arg2 : i32, i32
  }
  func.func @transform_3(%arg0: i32, %arg1: i32, %arg2: i32) -> (i32, i32, i32, i32) {
    %c0_i32 = arith.constant 0 : i32
    %c0_i32_0 = arith.constant 0 : i32
    return %arg0, %arg1, %c0_i32, %arg2 : i32, i32, i32, i32
  }
  func.func @transform_4(%arg0: i32, %arg1: i32, %arg2: i32) -> (i32, i32, i32) {
    %c0_i32 = arith.constant 0 : i32
    return %arg0, %arg1, %arg2 : i32, i32, i32
  }
  func.func @transform_5(%arg0: i32, %arg1: i32, %arg2: i32) -> (i32, i32, i32) {
    %c0_i32 = arith.constant 0 : i32
    return %arg0, %arg1, %arg2 : i32, i32, i32
  }
}

</mosaic_0001>

<llo_original>
// kernel: conv2d_block.1
$region0: #{conv2d_block.1}
  #allocation0 [shape = 'u32[]', space=smem, size = 0x4, offset = 0x4, fixed_abs, tag = 'smem constant byte address 0x4 - core index']
  #allocation1 [shape = 'u32[144,128]{1,0:T(1,128)}', space=vmem, size = 0x12000, scoped, tag = 'internal scratch']
  %s0 = inlined_call_operand.vmem [shape: bf16[2,18,18,4], index: 0, kind: input, shape index: {}, may-alias: {0,1}]
  %s1 = inlined_call_operand.vmem [shape: bf16[2,18,18,4], index: 1, kind: input, shape index: {}, may-alias: {0,1}]
  %s2 = inlined_call_operand.vmem [shape: bf16[36,128], index: 2, kind: input, shape index: {}]
  %s3 = inlined_call_operand.vmem [shape: f32[2,16,16,128], index: 3, kind: output, shape index: {0}]
  %s4 = inlined_call_operand.vmem [shape: f32[2,16,128], index: 4, kind: output, shape index: {1}]
  %s5 = inlined_call_operand.vmem [shape: f32[2,16,128], index: 5, kind: output, shape index: {2}]
  %6 = xla_tuple %s3, %s4, %s5
  %s7 = sld [smem:[#allocation0]]
  $region61: #{conv2d_block.1} parent=0
    _
  %s9 = ssub.s32 1, %s7
  %s10 = scalar_select 0, %s9, %s7
  loop: start=0, step=1, limit=6
  $region2: #{conv2d_block.1} parent=0 // loop_pre_header
    _
  $region3: #{conv2d_block.1} parent=0 // loop_header
    %s12 = sphi 0, %s16
    %p13 = scmp.ge.s32.totalorder %s12, 6
    %s19 = sphi 0, %s38
    %s20 = sphi 0, %s34
    %s21 = sphi 0, %s30
    %s22 = sphi 0, %s19
    %s23 = sphi 0, %s20
    %s24 = sphi 0, %s21
    %s25 = sphi 0, %s22
    %s26 = sphi 0, %s23
    %s27 = sphi 0, %s24
    %s43 = sphi 0, %s45
    %s46 = sphi 0, %s43
    %s47 = sphi 0, %s46
    %s63 = sphi 0, %s47
    %s75 = sphi 0, %s77
    %s78 = sphi 0, %s75
    %s79 = sphi 0, %s78
    %s95 = sphi 0, %s79
    %s101 = sphi 0, %s103
    %s104 = sphi 0, %s101
    %s105 = sphi 0, %s104
    %s121 = sphi 0, %s105
    %s131 = sphi 0, %s133
    %s134 = sphi 0, %s131
    %s135 = sphi 0, %s134
    %s151 = sphi 0, %s135
    %s161 = sphi 0, %s163
    %s164 = sphi 0, %s161
    %s165 = sphi 0, %s164
    %s181 = sphi 0, %s165
    %s191 = sphi 0, %s193
    %s194 = sphi 0, %s191
    %s195 = sphi 0, %s194
    %s211 = sphi 0, %s195
  $region4: #{conv2d_block.1} parent=0 // loop_header_branch
    %15 = sbr.rel (%p13) target = $region8
  $region5: #{conv2d_block.1} parent=0 // loop_body
    %s17 = ssub.s32 %s12, 1
    %s18 = ssub.s32 %s12, 2
    %s28 = sadd.s32 1, %s21
    %p29 = scmp.ge.s32.totalorder %s28, 1
    %s30 = scalar_select %p29, 0, %s28
    %s31 = sadd.s32 1, %s20
    %s32 = scalar_select %p29, %s31, %s20
    %p33 = scmp.ge.s32.totalorder %s32, 2
    %s34 = scalar_select %p33, 0, %s32
    %s35 = sadd.s32 1, %s19
    %s36 = scalar_select %p33, %s35, %s19
    %p37 = scmp.ge.s32.totalorder %s36, 2
    %s38 = scalar_select %p37, 0, %s36
    %s39 = ssub.s32 %s19, %s38
    %s40 = ssub.s32 %s20, %s34
    %s41 = sor.u32 %s39, %s40
    %p42 = scmp.eq.s32.totalorder %s41, 0
    %s44 = sadd.s32 %s43, 1
    %s45 = scalar_select %p42, %s43, %s44
    %p48 = pneg %p42
    %p49 = scmp.eq.s32.totalorder %s12, 3
    %p50 = por %p48, %p49
    %p51 = scmp.ne.s32.totalorder %s43, %s46
    %p52 = scmp.eq.s32.totalorder %s12, 0
    %p53 = por %p51, %p52
    %p54 = scmp.ne.s32.totalorder %s43, %s46
    %p55 = scmp.eq.s32.totalorder %s17, 3
    %p56 = por %p54, %p55
    %p57 = scmp.ne.s32.totalorder %s46, %s47
    %p58 = scmp.eq.s32.totalorder %s17, 0
    %p59 = por %p57, %p58
    %p60 = scmp.ne.s32.totalorder %s46, %s47
    %p61 = scmp.eq.s32.totalorder %s18, 3
    %p62 = por %p60, %p61
    %p64 = scmp.ne.s32.totalorder %s47, %s63
    %p65 = scmp.eq.s32.totalorder %s18, 0
    %p66 = por %p64, %p65
    %s67 = sadd.s32 %s20, 1
    %s68 = smul.u32 %s67, 4
    %s69 = sadd.s32 %s34, 1
    %s70 = smul.u32 %s69, 4
    %s71 = ssub.s32 %s19, %s38
    %s72 = ssub.s32 %s68, %s70
    %s73 = sor.u32 %s71, %s72
    %p74 = scmp.eq.s32.totalorder %s73, 0
    %s76 = sadd.s32 %s75, 1
    %s77 = scalar_select %p74, %s75, %s76
    %p80 = pneg %p74
    %p81 = scmp.eq.s32.totalorder %s12, 3
    %p82 = por %p80, %p81
    %p83 = scmp.ne.s32.totalorder %s75, %s78
    %p84 = scmp.eq.s32.totalorder %s12, 0
    %p85 = por %p83, %p84
    %p86 = scmp.ne.s32.totalorder %s75, %s78
    %p87 = scmp.eq.s32.totalorder %s17, 3
    %p88 = por %p86, %p87
    %p89 = scmp.ne.s32.totalorder %s78, %s79
    %p90 = scmp.eq.s32.totalorder %s17, 0
    %p91 = por %p89, %p90
    %p92 = scmp.ne.s32.totalorder %s78, %s79
    %p93 = scmp.eq.s32.totalorder %s18, 3
    %p94 = por %p92, %p93
    %p96 = scmp.ne.s32.totalorder %s79, %s95
    %p97 = scmp.eq.s32.totalorder %s18, 0
    %p98 = por %p96, %p97
    %s99 = ssub.s32 %s21, %s30
    %p100 = scmp.eq.s32.totalorder %s99, 0
    %s102 = sadd.s32 %s101, 1
    %s103 = scalar_select %p100, %s101, %s102
    %p106 = pneg %p100
    %p107 = scmp.eq.s32.totalorder %s12, 3
    %p108 = por %p106, %p107
    %p109 = scmp.ne.s32.totalorder %s101, %s104
    %p110 = scmp.eq.s32.totalorder %s12, 0
    %p111 = por %p109, %p110
    %p112 = scmp.ne.s32.totalorder %s101, %s104
    %p113 = scmp.eq.s32.totalorder %s17, 3
    %p114 = por %p112, %p113
    %p115 = scmp.ne.s32.totalorder %s104, %s105
    %p116 = scmp.eq.s32.totalorder %s17, 0
    %p117 = por %p115, %p116
    %p118 = scmp.ne.s32.totalorder %s104, %s105
    %p119 = scmp.eq.s32.totalorder %s18, 3
    %p120 = por %p118, %p119
    %p122 = scmp.ne.s32.totalorder %s105, %s121
    %p123 = scmp.eq.s32.totalorder %s18, 0
    %p124 = por %p122, %p123
    %s125 = ssub.s32 %s19, %s38
    %s126 = ssub.s32 %s20, %s34
    %s127 = sor.u32 %s125, %s126
    %s128 = ssub.s32 %s21, %s30
    %s129 = sor.u32 %s127, %s128
    %p130 = scmp.eq.s32.totalorder %s129, 0
    %s132 = sadd.s32 %s131, 1
    %s133 = scalar_select %p130, %s131, %s132
    %p136 = pneg %p130
    %p137 = scmp.eq.s32.totalorder %s12, 3
    %p138 = por %p136, %p137
    %p139 = scmp.ne.s32.totalorder %s131, %s134
    %p140 = scmp.eq.s32.totalorder %s12, 0
    %p141 = por %p139, %p140
    %p142 = scmp.ne.s32.totalorder %s131, %s134
    %p143 = scmp.eq.s32.totalorder %s17, 3
    %p144 = por %p142, %p143
    %p145 = scmp.ne.s32.totalorder %s134, %s135
    %p146 = scmp.eq.s32.totalorder %s17, 0
    %p147 = por %p145, %p146
    %p148 = scmp.ne.s32.totalorder %s134, %s135
    %p149 = scmp.eq.s32.totalorder %s18, 3
    %p150 = por %p148, %p149
    %p152 = scmp.ne.s32.totalorder %s135, %s151
    %p153 = scmp.eq.s32.totalorder %s18, 0
    %p154 = por %p152, %p153
    %s155 = ssub.s32 %s19, %s38
    %s156 = ssub.s32 %s20, %s34
    %s157 = sor.u32 %s155, %s156
    %s158 = ssub.s32 %s21, %s30
    %s159 = sor.u32 %s157, %s158
    %p160 = scmp.eq.s32.totalorder %s159, 0
    %s162 = sadd.s32 %s161, 1
    %s163 = scalar_select %p160, %s161, %s162
    %p166 = pneg %p160
    %p167 = scmp.eq.s32.totalorder %s12, 3
    %p168 = por %p166, %p167
    %p169 = scmp.ne.s32.totalorder %s161, %s164
    %p170 = scmp.eq.s32.totalorder %s12, 0
    %p171 = por %p169, %p170
    %p172 = scmp.ne.s32.totalorder %s161, %s164
    %p173 = scmp.eq.s32.totalorder %s17, 3
    %p174 = por %p172, %p173
    %p175 = scmp.ne.s32.totalorder %s164, %s165
    %p176 = scmp.eq.s32.totalorder %s17, 0
    %p177 = por %p175, %p176
    %p178 = scmp.ne.s32.totalorder %s164, %s165
    %p179 = scmp.eq.s32.totalorder %s18, 3
    %p180 = por %p178, %p179
    %p182 = scmp.ne.s32.totalorder %s165, %s181
    %p183 = scmp.eq.s32.totalorder %s18, 0
    %p184 = por %p182, %p183
    %s185 = ssub.s32 %s19, %s38
    %s186 = ssub.s32 %s20, %s34
    %s187 = sor.u32 %s185, %s186
    %s188 = ssub.s32 %s21, %s30
    %s189 = sor.u32 %s187, %s188
    %p190 = scmp.eq.s32.totalorder %s189, 0
    %s192 = sadd.s32 %s191, 1
    %s193 = scalar_select %p190, %s191, %s192
    %p196 = pneg %p190
    %p197 = scmp.eq.s32.totalorder %s12, 3
    %p198 = por %p196, %p197
    %p199 = scmp.ne.s32.totalorder %s191, %s194
    %p200 = scmp.eq.s32.totalorder %s12, 0
    %p201 = por %p199, %p200
    %p202 = scmp.ne.s32.totalorder %s191, %s194
    %p203 = scmp.eq.s32.totalorder %s17, 3
    %p204 = por %p202, %p203
    %p205 = scmp.ne.s32.totalorder %s194, %s195
    %p206 = scmp.eq.s32.totalorder %s17, 0
    %p207 = por %p205, %p206
    %p208 = scmp.ne.s32.totalorder %s194, %s195
    %p209 = scmp.eq.s32.totalorder %s18, 3
    %p210 = por %p208, %p209
    %p212 = scmp.ne.s32.totalorder %s195, %s211
    %p213 = scmp.eq.s32.totalorder %s18, 0
    %p214 = por %p212, %p213
    %p215 = scmp.le.s32.totalorder 1, %s12
    %p216 = scmp.lt.s32.totalorder %s12, 5
    %p217 = pnand %p215, %p216
    %p218 = pneg %p217
    // Predicated region
    $region9: #{conv2d_block.1} parent=5 // pred_check
      _
    $region10: #{conv2d_block.1} parent=5 // pred_check_branch
      %220 = sbr.rel (%p217) target = $region12
    $region11: #{conv2d_block.1} parent=5 // pred_region
      %s221 = ssub.s32 %s12, 1
      // Predicated region
      $region13: #{conv2d_block.1} parent=11 // pred_check
        %p222 = pneg %p117
      $region14: #{conv2d_block.1} parent=11 // pred_check_branch
        %224 = sbr.rel (%p222) target = $region16
      $region15: #{conv2d_block.1} parent=11 // pred_region
        %p225 = scmp.lt.s32.totalorder %s24, 0
        %s226 = scalar_select %p225, %s24, 0
        %s227 = smul.addr %s226, 4
        %s228 = scalar_lea.vmem %s2, %s227
      $region16: #{conv2d_block.1} parent=11 // pred_fallthru
        _
    $region12: #{conv2d_block.1} parent=5 // pred_fallthru
      _
    %p229 = scmp.lt.s32.totalorder %s12, 4
    // Predicated region
    $region17: #{conv2d_block.1} parent=5 // pred_check
      %p230 = pneg %p229
    $region18: #{conv2d_block.1} parent=5 // pred_check_branch
      %232 = sbr.rel (%p230) target = $region20
    $region19: #{conv2d_block.1} parent=5 // pred_region
      // Predicated region
      $region21: #{conv2d_block.1} parent=19 // pred_check
        %p233 = pneg %p53
      $region22: #{conv2d_block.1} parent=19 // pred_check_branch
        %235 = sbr.rel (%p233) target = $region24
      $region23: #{conv2d_block.1} parent=19 // pred_region
        %s236 = smul.u32 8, %s20
        %s237 = ssub.s32 18, %s236
        %p238 = scmp.lt.s32.totalorder %s237, 8
        %s239 = scalar_select %p238, %s237, 8
        %s240 = smul.u32 64, %s239
        %s241 = smul.u32 %s240, 3
        %p242 = scmp.lt.s32.totalorder %s19, 1
        %s243 = scalar_select %p242, %s19, 1
        %p244 = scmp.lt.s32.totalorder %s236, 17
        %s245 = scalar_select %p244, %s236, 17
        %s246 = smul.addr %s245, 3
        %s247 = smul.addr %s243, 54
        %s248 = sadd.s32 %s246, %s247
        %s249 = smul.addr %s248, 4
        %s250 = scalar_lea.vmem %s0, %s249
        %s251 = smul.u32 8, %s20
        %s252 = ssub.s32 18, %s251
        %p253 = scmp.lt.s32.totalorder %s252, 8
        %s254 = scalar_select %p253, %s252, 8
        %s255 = smul.u32 64, %s254
        %s256 = smul.u32 %s255, 3
      $region24: #{conv2d_block.1} parent=19 // pred_fallthru
        _
      // Predicated region
      $region25: #{conv2d_block.1} parent=19 // pred_check
        %p257 = pneg %p85
      $region26: #{conv2d_block.1} parent=19 // pred_check_branch
        %259 = sbr.rel (%p257) target = $region28
      $region27: #{conv2d_block.1} parent=19 // pred_region
        %s260 = sadd.s32 %s20, 1
        %s261 = smul.u32 %s260, 4
        %s262 = smul.u32 2, %s261
        %p263 = scmp.lt.s32.totalorder %s19, 1
        %s264 = scalar_select %p263, %s19, 1
        %p265 = scmp.lt.s32.totalorder %s262, 17
        %s266 = scalar_select %p265, %s262, 17
        %s267 = smul.addr %s266, 3
        %s268 = smul.addr %s264, 54
        %s269 = sadd.s32 %s267, %s268
        %s270 = smul.addr %s269, 4
        %s271 = scalar_lea.vmem %s1, %s270
        %s272 = sadd.s32 %s20, 1
        %s273 = smul.u32 %s272, 4
        %s274 = smul.u32 2, %s273
      $region28: #{conv2d_block.1} parent=19 // pred_fallthru
        _
    $region20: #{conv2d_block.1} parent=5 // pred_fallthru
      _
    %p275 = scmp.le.s32.totalorder 1, %s12
    %p276 = scmp.lt.s32.totalorder %s12, 5
    %p277 = pnand %p275, %p276
    %p278 = pneg %p277
    // Predicated region
    $region29: #{conv2d_block.1} parent=5 // pred_check
      _
    $region30: #{conv2d_block.1} parent=5 // pred_check_branch
      %280 = sbr.rel (%p277) target = $region32
    $region31: #{conv2d_block.1} parent=5 // pred_region
      %s281 = ssub.s32 %s12, 1
      %s282 = smul.u32 8, %s23
      %s283 = ssub.s32 18, %s282
      %p284 = scmp.lt.s32.totalorder %s283, 8
      %s285 = scalar_select %p284, %s283, 8
      %s286 = smul.u32 64, %s285
      %s287 = smul.u32 %s286, 3
      %p288 = scmp.lt.s32.totalorder %s22, 1
      %s289 = scalar_select %p288, %s22, 1
      %p290 = scmp.lt.s32.totalorder %s282, 17
      %s291 = scalar_select %p290, %s282, 17
      %s292 = smul.addr %s291, 3
      %s293 = smul.addr %s289, 54
      %s294 = sadd.s32 %s292, %s293
      %s295 = smul.addr %s294, 4
      %s296 = scalar_lea.vmem %s0, %s295
      %p297 = pneg %p59
      %p298 = pneg %p56
      %s299 = sadd.s32 %s23, 1
      %s300 = smul.u32 %s299, 4
      %s301 = smul.u32 2, %s300
      %p302 = scmp.lt.s32.totalorder %s22, 1
      %s303 = scalar_select %p302, %s22, 1
      %p304 = scmp.lt.s32.totalorder %s301, 17
      %s305 = scalar_select %p304, %s301, 17
      %s306 = smul.addr %s305, 3
      %s307 = smul.addr %s303, 54
      %s308 = sadd.s32 %s306, %s307
      %s309 = smul.addr %s308, 4
      %s310 = scalar_lea.vmem %s1, %s309
      %p311 = pneg %p91
      %p312 = pneg %p88
      %p313 = scmp.lt.s32.totalorder %s24, 0
      %s314 = scalar_select %p313, %s24, 0
      %s315 = smul.addr %s314, 4
      %s316 = scalar_lea.vmem %s2, %s315
      %p317 = pneg %p117
      %p318 = pneg %p114
      %p319 = pneg %p147
      %p320 = pneg %p144
      %s321 = smul.u32 8, %s23
      %p322 = scmp.lt.s32.totalorder %s22, 1
      %s323 = scalar_select %p322, %s22, 1
      %p324 = scmp.lt.s32.totalorder %s321, 15
      %s325 = scalar_select %p324, %s321, 15
      %p326 = scmp.lt.s32.totalorder %s24, 0
      %s327 = scalar_select %p326, %s24, 0
      %s328 = smul.addr %s325, 2
      %s329 = sadd.s32 %s327, %s328
      %s330 = smul.addr %s323, 32
      %s331 = sadd.s32 %s329, %s330
      %s332 = smul.addr %s331, 8
      %s333 = scalar_lea.vmem %s3, %s332
      %p334 = pneg %p177
      %p335 = pneg %p174
      %p336 = scmp.lt.s32.totalorder %s22, 1
      %s337 = scalar_select %p336, %s22, 1
      %p338 = scmp.lt.s32.totalorder %s23, 1
      %s339 = scalar_select %p338, %s23, 1
      %p340 = scmp.lt.s32.totalorder %s24, 0
      %s341 = scalar_select %p340, %s24, 0
      %s342 = sadd.s32 %s341, %s339
      %s343 = smul.addr %s337, 2
      %s344 = sadd.s32 %s342, %s343
      %s345 = smul.addr %s344, 8
      %s346 = scalar_lea.vmem %s4, %s345
      %p347 = pneg %p207
      %p348 = pneg %p204
      %p349 = scmp.lt.s32.totalorder %s22, 1
      %s350 = scalar_select %p349, %s22, 1
      %p351 = scmp.lt.s32.totalorder %s23, 1
      %s352 = scalar_select %p351, %s23, 1
      %p353 = scmp.lt.s32.totalorder %s24, 0
      %s354 = scalar_select %p353, %s24, 0
      %s355 = sadd.s32 %s354, %s352
      %s356 = smul.addr %s350, 2
      %s357 = sadd.s32 %s355, %s356
      %s358 = smul.addr %s357, 8
      %s359 = scalar_lea.vmem %s5, %s358
      %s360 = smul.u32 8, %s23
      %s361 = ssub.s32 18, %s360
      %p362 = scmp.lt.s32.totalorder %s361, 8
      %s363 = scalar_select %p362, %s361, 8
      %s364 = smul.u32 64, %s363
      %s365 = smul.u32 %s364, 3
      %p366 = scmp.lt.s32.totalorder %s22, 1
      %s367 = scalar_select %p366, %s22, 1
      %p368 = scmp.lt.s32.totalorder %s360, 17
      %s369 = scalar_select %p368, %s360, 17
      %s370 = smul.addr %s369, 3
      %s371 = smul.addr %s367, 54
      %s372 = sadd.s32 %s370, %s371
      %s373 = smul.addr %s372, 4
      %s374 = scalar_lea.vmem %s0, %s373
      %s375 = smul.u32 8, %s23
      %s376 = ssub.s32 18, %s375
      %p377 = scmp.lt.s32.totalorder %s376, 8
      %s378 = scalar_select %p377, %s376, 8
      %s379 = smul.u32 64, %s378
      %s380 = smul.u32 %s379, 3
      %s381 = sadd.s32 %s23, 1
      %s382 = smul.u32 %s381, 4
      %s383 = smul.u32 2, %s382
      %p384 = scmp.lt.s32.totalorder %s22, 1
      %s385 = scalar_select %p384, %s22, 1
      %p386 = scmp.lt.s32.totalorder %s383, 17
      %s387 = scalar_select %p386, %s383, 17
      %s388 = smul.addr %s387, 3
      %s389 = smul.addr %s385, 54
      %s390 = sadd.s32 %s388, %s389
      %s391 = smul.addr %s390, 4
      %s392 = scalar_lea.vmem %s1, %s391
      %s393 = sadd.s32 %s23, 1
      %s394 = smul.u32 %s393, 4
      %s395 = smul.u32 2, %s394
      %p396 = scmp.lt.s32.totalorder %s24, 0
      %s397 = scalar_select %p396, %s24, 0
      %s398 = smul.addr %s397, 4
      %s399 = scalar_lea.vmem %s2, %s398
      %s400 = smul.u32 8, %s23
      %p401 = scmp.lt.s32.totalorder %s22, 1
      %s402 = scalar_select %p401, %s22, 1
      %p403 = scmp.lt.s32.totalorder %s400, 15
      %s404 = scalar_select %p403, %s400, 15
      %p405 = scmp.lt.s32.totalorder %s24, 0
      %s406 = scalar_select %p405, %s24, 0
      %s407 = smul.addr %s404, 2
      %s408 = sadd.s32 %s406, %s407
      %s409 = smul.addr %s402, 32
      %s410 = sadd.s32 %s408, %s409
      %s411 = smul.addr %s410, 8
      %s412 = scalar_lea.vmem %s3, %s411
      %s413 = smul.u32 8, %s23
      %p414 = scmp.lt.s32.totalorder %s22, 1
      %s415 = scalar_select %p414, %s22, 1
      %p416 = scmp.lt.s32.totalorder %s23, 1
      %s417 = scalar_select %p416, %s23, 1
      %p418 = scmp.lt.s32.totalorder %s24, 0
      %s419 = scalar_select %p418, %s24, 0
      %s420 = sadd.s32 %s419, %s417
      %s421 = smul.addr %s415, 2
      %s422 = sadd.s32 %s420, %s421
      %s423 = smul.addr %s422, 8
      %s424 = scalar_lea.vmem %s4, %s423
      %p425 = scmp.lt.s32.totalorder %s22, 1
      %s426 = scalar_select %p425, %s22, 1
      %p427 = scmp.lt.s32.totalorder %s23, 1
      %s428 = scalar_select %p427, %s23, 1
      %p429 = scmp.lt.s32.totalorder %s24, 0
      %s430 = scalar_select %p429, %s24, 0
      %s431 = sadd.s32 %s430, %s428
      %s432 = smul.addr %s426, 2
      %s433 = sadd.s32 %s431, %s432
      %s434 = smul.addr %s433, 8
      %s435 = scalar_lea.vmem %s5, %s434
      %v437 = vld [vmem:[%s374] sm:$0xf]
      %v438 = vld [vmem:[%s374 + $0x4] sm:$0xf]
      %v439 = vld [vmem:[%s374 + $0x8] sm:$0x1]
      %v440 = vld [vmem:[%s374 + $0xc] sm:$0xf]
      %v441 = vld [vmem:[%s374 + $0x10] sm:$0xf]
      %v442 = vld [vmem:[%s374 + $0x14] sm:$0x1]
      %v443 = vld [vmem:[%s374 + $0x18] sm:$0xf]
      %v444 = vld [vmem:[%s374 + $0x1c] sm:$0xf]
      %v445 = vld [vmem:[%s374 + $0x20] sm:$0x1]
      %v446 = vld [vmem:[%s374 + $0x24] sm:$0xf]
      %v447 = vld [vmem:[%s374 + $0x28] sm:$0xf]
      %v448 = vld [vmem:[%s374 + $0x2c] sm:$0x1]
      %v449 = vld [vmem:[%s374 + $0x30] sm:$0xf]
      %v450 = vld [vmem:[%s374 + $0x34] sm:$0xf]
      %v451 = vld [vmem:[%s374 + $0x38] sm:$0x1]
      %v452 = vld [vmem:[%s374 + $0x3c] sm:$0xf]
      %v453 = vld [vmem:[%s374 + $0x40] sm:$0xf]
      %v454 = vld [vmem:[%s374 + $0x44] sm:$0x1]
      %v455 = vld [vmem:[%s374 + $0x48] sm:$0xf]
      %v456 = vld [vmem:[%s374 + $0x4c] sm:$0xf]
      %v457 = vld [vmem:[%s374 + $0x50] sm:$0x1]
      %v458 = vld [vmem:[%s374 + $0x54] sm:$0xf]
      %v459 = vld [vmem:[%s374 + $0x58] sm:$0xf]
      %v460 = vld [vmem:[%s374 + $0x5c] sm:$0x1]
      %v461 = vld [vmem:[%s392] sm:$0xf]
      %v462 = vld [vmem:[%s392 + $0x4] sm:$0xf]
      %v463 = vld [vmem:[%s392 + $0x8] sm:$0x1]
      %v464 = vld [vmem:[%s392 + $0xc] sm:$0xf]
      %v465 = vld [vmem:[%s392 + $0x10] sm:$0xf]
      %v466 = vld [vmem:[%s392 + $0x14] sm:$0x1]
      %v483 = vunpack.c.l.b16 %v437
      %v484 = vunpack.c.l.b16 %v438
      %v485 = vunpack.c.l.b16 %v440
      %v486 = vunpack.c.l.b16 %v441
      %v487 = vunpack.c.l.b16 %v443
      %v488 = vunpack.c.l.b16 %v444
      %v489 = vunpack.c.l.b16 %v446
      %v490 = vunpack.c.l.b16 %v447
      %v491 = vunpack.c.l.b16 %v449
      %v492 = vunpack.c.l.b16 %v450
      %v493 = vunpack.c.l.b16 %v452
      %v494 = vunpack.c.l.b16 %v453
      %v495 = vunpack.c.l.b16 %v455
      %v496 = vunpack.c.l.b16 %v456
      %v497 = vunpack.c.l.b16 %v458
      %v498 = vunpack.c.l.b16 %v459
      %v499 = vpack.c.b16 %v484, %v483
      %v500 = vpack.c.b16 %v486, %v485
      %v501 = vpack.c.b16 %v488, %v487
      %v502 = vpack.c.b16 %v490, %v489
      %v503 = vpack.c.b16 %v492, %v491
      %v504 = vpack.c.b16 %v494, %v493
      %v505 = vpack.c.b16 %v496, %v495
      %v506 = vpack.c.b16 %v498, %v497
      %v515 = vunpack.c.l.b16 %v439
      %v516 = vunpack.c.l.b16 %v442
      %v517 = vunpack.c.l.b16 %v445
      %v518 = vunpack.c.l.b16 %v448
      %v519 = vunpack.c.l.b16 %v451
      %v520 = vunpack.c.l.b16 %v454
      %v521 = vunpack.c.l.b16 %v457
      %v522 = vunpack.c.l.b16 %v460
      %v523 = vpack.c.b16 %v515, %v515
      %v524 = vpack.c.b16 %v516, %v516
      %v525 = vpack.c.b16 %v517, %v517
      %v526 = vpack.c.b16 %v518, %v518
      %v527 = vpack.c.b16 %v519, %v519
      %v528 = vpack.c.b16 %v520, %v520
      %v529 = vpack.c.b16 %v521, %v521
      %v530 = vpack.c.b16 %v522, %v522
      %vm531 = vsmask.f32 7424
      %v533 = vshrl.u32 %v499, 16
      %v535 = vshll.u32 %v499, 16
      %v537 = vrot.slane %v535, 1
      %v538 = vor.u32 %v533, %v537
      %v540 = vshll.u32 %v523, 16
      %v542 = vrot.slane %v540, 1
      %v543 = vsel %vm531, %v538, %v542
      %v545 = vshrl.u32 %v500, 16
      %v547 = vshll.u32 %v500, 16
      %v549 = vrot.slane %v547, 1
      %v550 = vor.u32 %v545, %v549
      %v552 = vshll.u32 %v524, 16
      %v554 = vrot.slane %v552, 1
      %v555 = vsel %vm531, %v550, %v554
      %v557 = vshrl.u32 %v501, 16
      %v559 = vshll.u32 %v501, 16
      %v561 = vrot.slane %v559, 1
      %v562 = vor.u32 %v557, %v561
      %v564 = vshll.u32 %v525, 16
      %v566 = vrot.slane %v564, 1
      %v567 = vsel %vm531, %v562, %v566
      %v569 = vshrl.u32 %v502, 16
      %v571 = vshll.u32 %v502, 16
      %v573 = vrot.slane %v571, 1
      %v574 = vor.u32 %v569, %v573
      %v576 = vshll.u32 %v526, 16
      %v578 = vrot.slane %v576, 1
      %v579 = vsel %vm531, %v574, %v578
      %v581 = vshrl.u32 %v503, 16
      %v583 = vshll.u32 %v503, 16
      %v585 = vrot.slane %v583, 1
      %v586 = vor.u32 %v581, %v585
      %v588 = vshll.u32 %v527, 16
      %v590 = vrot.slane %v588, 1
      %v591 = vsel %vm531, %v586, %v590
      %v593 = vshrl.u32 %v504, 16
      %v595 = vshll.u32 %v504, 16
      %v597 = vrot.slane %v595, 1
      %v598 = vor.u32 %v593, %v597
      %v600 = vshll.u32 %v528, 16
      %v602 = vrot.slane %v600, 1
      %v603 = vsel %vm531, %v598, %v602
      %v605 = vshrl.u32 %v505, 16
      %v607 = vshll.u32 %v505, 16
      %v609 = vrot.slane %v607, 1
      %v610 = vor.u32 %v605, %v609
      %v612 = vshll.u32 %v529, 16
      %v614 = vrot.slane %v612, 1
      %v615 = vsel %vm531, %v610, %v614
      %v617 = vshrl.u32 %v506, 16
      %v619 = vshll.u32 %v506, 16
      %v621 = vrot.slane %v619, 1
      %v622 = vor.u32 %v617, %v621
      %v624 = vshll.u32 %v530, 16
      %v626 = vrot.slane %v624, 1
      %v627 = vsel %vm531, %v622, %v626
      %628 = vrot.lane.b32.xlu0 %v543, 4
      %v629 = vpop.permute.xlu0 %628
      %630 = vrot.lane.b32.xlu0 %v555, 4
      %v631 = vpop.permute.xlu0 %630
      %632 = vrot.lane.b32.xlu0 %v567, 4
      %v633 = vpop.permute.xlu0 %632
      %634 = vrot.lane.b32.xlu0 %v579, 4
      %v635 = vpop.permute.xlu0 %634
      %636 = vrot.lane.b32.xlu0 %v591, 4
      %v637 = vpop.permute.xlu0 %636
      %638 = vrot.lane.b32.xlu0 %v603, 4
      %v639 = vpop.permute.xlu0 %638
      %640 = vrot.lane.b32.xlu0 %v615, 4
      %v641 = vpop.permute.xlu0 %640
      %642 = vrot.lane.b32.xlu0 %v627, 4
      %v643 = vpop.permute.xlu0 %642
      %vm644 = vcmask 1046528
      %v645 = vrot.slane %v499, 1
      %v646 = vrot.slane %v523, 1
      %v647 = vsel %vm644, %v645, %v646
      %v648 = vrot.slane %v500, 1
      %v649 = vrot.slane %v524, 1
      %v650 = vsel %vm644, %v648, %v649
      %v651 = vrot.slane %v501, 1
      %v652 = vrot.slane %v525, 1
      %v653 = vsel %vm644, %v651, %v652
      %v654 = vrot.slane %v502, 1
      %v655 = vrot.slane %v526, 1
      %v656 = vsel %vm644, %v654, %v655
      %v657 = vrot.slane %v503, 1
      %v658 = vrot.slane %v527, 1
      %v659 = vsel %vm644, %v657, %v658
      %v660 = vrot.slane %v504, 1
      %v661 = vrot.slane %v528, 1
      %v662 = vsel %vm644, %v660, %v661
      %v663 = vrot.slane %v505, 1
      %v664 = vrot.slane %v529, 1
      %v665 = vsel %vm644, %v663, %v664
      %v666 = vrot.slane %v506, 1
      %v667 = vrot.slane %v530, 1
      %v668 = vsel %vm644, %v666, %v667
      %669 = vrot.lane.b32.xlu0 %v647, 8
      %v670 = vpop.permute.xlu0 %669
      %671 = vrot.lane.b32.xlu0 %v650, 8
      %v672 = vpop.permute.xlu0 %671
      %673 = vrot.lane.b32.xlu0 %v653, 8
      %v674 = vpop.permute.xlu0 %673
      %675 = vrot.lane.b32.xlu0 %v656, 8
      %v676 = vpop.permute.xlu0 %675
      %677 = vrot.lane.b32.xlu0 %v659, 8
      %v678 = vpop.permute.xlu0 %677
      %679 = vrot.lane.b32.xlu0 %v662, 8
      %v680 = vpop.permute.xlu0 %679
      %681 = vrot.lane.b32.xlu0 %v665, 8
      %v682 = vpop.permute.xlu0 %681
      %683 = vrot.lane.b32.xlu0 %v668, 8
      %v684 = vpop.permute.xlu0 %683
      %v687 = vunpack.c.l.b16 %v461
      %v688 = vunpack.c.l.b16 %v462
      %v689 = vpack.c.b16 %v688, %v687
      %690 = vrot.lane.b32.xlu0 %v500, 12
      %v691 = vpop.permute.xlu0 %690
      %692 = vrot.lane.b32.xlu0 %v501, 12
      %v693 = vpop.permute.xlu0 %692
      %694 = vrot.lane.b32.xlu0 %v502, 12
      %v695 = vpop.permute.xlu0 %694
      %696 = vrot.lane.b32.xlu0 %v503, 12
      %v697 = vpop.permute.xlu0 %696
      %698 = vrot.lane.b32.xlu0 %v504, 12
      %v699 = vpop.permute.xlu0 %698
      %700 = vrot.lane.b32.xlu0 %v505, 12
      %v701 = vpop.permute.xlu0 %700
      %702 = vrot.lane.b32.xlu0 %v506, 12
      %v703 = vpop.permute.xlu0 %702
      %704 = vrot.lane.b32.xlu0 %v689, 12
      %v705 = vpop.permute.xlu0 %704
      %v707 = vunpack.c.l.b16 %v463
      %v708 = vpack.c.b16 %v707, %v707
      %v710 = vshrl.u32 %v689, 16
      %v712 = vshll.u32 %v689, 16
      %v714 = vrot.slane %v712, 1
      %v715 = vor.u32 %v710, %v714
      %v717 = vshll.u32 %v708, 16
      %v719 = vrot.slane %v717, 1
      %v720 = vsel %vm531, %v715, %v719
      %721 = vrot.lane.b32.xlu0 %v555, 16
      %v722 = vpop.permute.xlu0 %721
      %723 = vrot.lane.b32.xlu0 %v567, 16
      %v724 = vpop.permute.xlu0 %723
      %725 = vrot.lane.b32.xlu0 %v579, 16
      %v726 = vpop.permute.xlu0 %725
      %727 = vrot.lane.b32.xlu0 %v591, 16
      %v728 = vpop.permute.xlu0 %727
      %729 = vrot.lane.b32.xlu0 %v603, 16
      %v730 = vpop.permute.xlu0 %729
      %731 = vrot.lane.b32.xlu0 %v615, 16
      %v732 = vpop.permute.xlu0 %731
      %733 = vrot.lane.b32.xlu0 %v627, 16
      %v734 = vpop.permute.xlu0 %733
      %735 = vrot.lane.b32.xlu0 %v720, 16
      %v736 = vpop.permute.xlu0 %735
      %v737 = vrot.slane %v689, 1
      %v738 = vrot.slane %v708, 1
      %v739 = vsel %vm644, %v737, %v738
      %740 = vrot.lane.b32.xlu0 %v650, 20
      %v741 = vpop.permute.xlu0 %740
      %742 = vrot.lane.b32.xlu0 %v653, 20
      %v743 = vpop.permute.xlu0 %742
      %744 = vrot.lane.b32.xlu0 %v656, 20
      %v745 = vpop.permute.xlu0 %744
      %746 = vrot.lane.b32.xlu0 %v659, 20
      %v747 = vpop.permute.xlu0 %746
      %748 = vrot.lane.b32.xlu0 %v662, 20
      %v749 = vpop.permute.xlu0 %748
      %750 = vrot.lane.b32.xlu0 %v665, 20
      %v751 = vpop.permute.xlu0 %750
      %752 = vrot.lane.b32.xlu0 %v668, 20
      %v753 = vpop.permute.xlu0 %752
      %754 = vrot.lane.b32.xlu0 %v739, 20
      %v755 = vpop.permute.xlu0 %754
      %v758 = vunpack.c.l.b16 %v464
      %v759 = vunpack.c.l.b16 %v465
      %v760 = vpack.c.b16 %v759, %v758
      %761 = vrot.lane.b32.xlu0 %v501, 24
      %v762 = vpop.permute.xlu0 %761
      %763 = vrot.lane.b32.xlu0 %v502, 24
      %v764 = vpop.permute.xlu0 %763
      %765 = vrot.lane.b32.xlu0 %v503, 24
      %v766 = vpop.permute.xlu0 %765
      %767 = vrot.lane.b32.xlu0 %v504, 24
      %v768 = vpop.permute.xlu0 %767
      %769 = vrot.lane.b32.xlu0 %v505, 24
      %v770 = vpop.permute.xlu0 %769
      %771 = vrot.lane.b32.xlu0 %v506, 24
      %v772 = vpop.permute.xlu0 %771
      %773 = vrot.lane.b32.xlu0 %v689, 24
      %v774 = vpop.permute.xlu0 %773
      %775 = vrot.lane.b32.xlu0 %v760, 24
      %v776 = vpop.permute.xlu0 %775
      %v778 = vunpack.c.l.b16 %v466
      %v779 = vpack.c.b16 %v778, %v778
      %v781 = vshrl.u32 %v760, 16
      %v783 = vshll.u32 %v760, 16
      %v785 = vrot.slane %v783, 1
      %v786 = vor.u32 %v781, %v785
      %v788 = vshll.u32 %v779, 16
      %v790 = vrot.slane %v788, 1
      %v791 = vsel %vm531, %v786, %v790
      %792 = vrot.lane.b32.xlu0 %v567, 28
      %v793 = vpop.permute.xlu0 %792
      %794 = vrot.lane.b32.xlu0 %v579, 28
      %v795 = vpop.permute.xlu0 %794
      %796 = vrot.lane.b32.xlu0 %v591, 28
      %v797 = vpop.permute.xlu0 %796
      %798 = vrot.lane.b32.xlu0 %v603, 28
      %v799 = vpop.permute.xlu0 %798
      %800 = vrot.lane.b32.xlu0 %v615, 28
      %v801 = vpop.permute.xlu0 %800
      %802 = vrot.lane.b32.xlu0 %v627, 28
      %v803 = vpop.permute.xlu0 %802
      %804 = vrot.lane.b32.xlu0 %v720, 28
      %v805 = vpop.permute.xlu0 %804
      %806 = vrot.lane.b32.xlu0 %v791, 28
      %v807 = vpop.permute.xlu0 %806
      %v808 = vrot.slane %v760, 1
      %v809 = vrot.slane %v779, 1
      %v810 = vsel %vm644, %v808, %v809
      %811 = vrot.lane.b32.xlu0 %v653, 32
      %v812 = vpop.permute.xlu0 %811
      %813 = vrot.lane.b32.xlu0 %v656, 32
      %v814 = vpop.permute.xlu0 %813
      %815 = vrot.lane.b32.xlu0 %v659, 32
      %v816 = vpop.permute.xlu0 %815
      %817 = vrot.lane.b32.xlu0 %v662, 32
      %v818 = vpop.permute.xlu0 %817
      %819 = vrot.lane.b32.xlu0 %v665, 32
      %v820 = vpop.permute.xlu0 %819
      %821 = vrot.lane.b32.xlu0 %v668, 32
      %v822 = vpop.permute.xlu0 %821
      %823 = vrot.lane.b32.xlu0 %v739, 32
      %v824 = vpop.permute.xlu0 %823
      %825 = vrot.lane.b32.xlu0 %v810, 32
      %v826 = vpop.permute.xlu0 %825
      %vm827 = vcmask 31744
      %v829 = vsel %vm827, %v499, %v629
      %v831 = vsel %vm827, %v500, %v631
      %v833 = vsel %vm827, %v501, %v633
      %v835 = vsel %vm827, %v502, %v635
      %v837 = vsel %vm827, %v503, %v637
      %v839 = vsel %vm827, %v504, %v639
      %v841 = vsel %vm827, %v505, %v641
      %v843 = vsel %vm827, %v506, %v643
      %vm844 = vcmask 64512
      %v846 = vsel %vm844, %v829, %v670
      %v848 = vsel %vm844, %v831, %v672
      %v850 = vsel %vm844, %v833, %v674
      %v852 = vsel %vm844, %v835, %v676
      %v854 = vsel %vm844, %v837, %v678
      %v856 = vsel %vm844, %v839, %v680
      %v858 = vsel %vm844, %v841, %v682
      %v860 = vsel %vm844, %v843, %v684
      %vm861 = vcmask 97280
      %v863 = vsel %vm861, %v846, %v691
      %v865 = vsel %vm861, %v848, %v693
      %v867 = vsel %vm861, %v850, %v695
      %v869 = vsel %vm861, %v852, %v697
      %v871 = vsel %vm861, %v854, %v699
      %v873 = vsel %vm861, %v856, %v701
      %v875 = vsel %vm861, %v858, %v703
      %v877 = vsel %vm861, %v860, %v705
      %vm878 = vcmask 130048
      %v880 = vsel %vm878, %v863, %v722
      %v882 = vsel %vm878, %v865, %v724
      %v884 = vsel %vm878, %v867, %v726
      %v886 = vsel %vm878, %v869, %v728
      %v888 = vsel %vm878, %v871, %v730
      %v890 = vsel %vm878, %v873, %v732
      %v892 = vsel %vm878, %v875, %v734
      %v894 = vsel %vm878, %v877, %v736
      %vm895 = vcmask 162816
      %v897 = vsel %vm895, %v880, %v741
      %v899 = vsel %vm895, %v882, %v743
      %v901 = vsel %vm895, %v884, %v745
      %v903 = vsel %vm895, %v886, %v747
      %v905 = vsel %vm895, %v888, %v749
      %v907 = vsel %vm895, %v890, %v751
      %v909 = vsel %vm895, %v892, %v753
      %v911 = vsel %vm895, %v894, %v755
      %vm912 = vcmask 195584
      %v914 = vsel %vm912, %v897, %v762
      %v916 = vsel %vm912, %v899, %v764
      %v918 = vsel %vm912, %v901, %v766
      %v920 = vsel %vm912, %v903, %v768
      %v922 = vsel %vm912, %v905, %v770
      %v924 = vsel %vm912, %v907, %v772
      %v926 = vsel %vm912, %v909, %v774
      %v928 = vsel %vm912, %v911, %v776
      %vm929 = vcmask 228352
      %v931 = vsel %vm929, %v914, %v793
      %v933 = vsel %vm929, %v916, %v795
      %v935 = vsel %vm929, %v918, %v797
      %v937 = vsel %vm929, %v920, %v799
      %v939 = vsel %vm929, %v922, %v801
      %v941 = vsel %vm929, %v924, %v803
      %v943 = vsel %vm929, %v926, %v805
      %v945 = vsel %vm929, %v928, %v807
      %vm946 = vcmask 261120
      %v948 = vsel %vm946, %v931, %v812
      %v950 = vsel %vm946, %v933, %v814
      %v952 = vsel %vm946, %v935, %v816
      %v954 = vsel %vm946, %v937, %v818
      %v956 = vsel %vm946, %v939, %v820
      %v958 = vsel %vm946, %v941, %v822
      %v960 = vsel %vm946, %v943, %v824
      %v962 = vsel %vm946, %v945, %v826
      %v963 = vld [vmem:[%s399] sm:$0xf]
      %v964 = vld [vmem:[%s399 + $0x4] sm:$0xf]
      %v965 = vld [vmem:[%s399 + $0x8] sm:$0xf]
      %v966 = vld [vmem:[%s399 + $0xc] sm:$0xf]
      %v967 = vld [vmem:[%s399 + $0x10] sm:$0x3]
      %v973 = vunpack.c.l.b16 %v963
      %v974 = vunpack.c.l.b16 %v964
      %v975 = vunpack.c.l.b16 %v965
      %v976 = vunpack.c.l.b16 %v966
      %v977 = vunpack.c.l.b16 %v967
      %v978 = vpack.c.b16 %v974, %v973
      %v979 = vpack.c.b16 %v976, %v975
      %v980 = vpack.c.b16 %v977, %v977
      %vm983 = vcmask 293888
      %v984 = vsel %vm983, %v948, 0
      %v986 = vsel %vm983, %v950, 0
      %v988 = vsel %vm983, %v952, 0
      %v990 = vsel %vm983, %v954, 0
      %v992 = vsel %vm983, %v956, 0
      %v994 = vsel %vm983, %v958, 0
      %v996 = vsel %vm983, %v960, 0
      %v998 = vsel %vm983, %v962, 0
      %vm1000 = vcmask 1041408
      %v1002 = vsel %vm1000, %v980, 0
      %1004 = vmatprep.subr.bf16.mxu0 0
      %1005 = vmatpush1.bf16.msra.mxu0 0
      %1006 = vmatprep.subr.bf16.mxu0 0
      %1007 = vmatpush1.bf16.msra.mxu0 0
      %1008 = vmatprep.subr.bf16.mxu0 0
      %1009 = vmatpush1.bf16.msra.mxu0 0
      %1010 = vmatprep.subr.bf16.mxu0 0
      %1011 = vmatpush1.bf16.msra.mxu0 0
      %1012 = vmatprep.subr.bf16.mxu0 0
      %1013 = vmatpush1.bf16.msra.mxu0 0
      %1014 = vmatprep.subr.bf16.mxu0 0
      %1015 = vmatpush1.bf16.msra.mxu0 %v1002
      %1016 = vmatprep.subr.bf16.mxu0 0
      %1017 = vmatpush1.bf16.msra.mxu0 %v979
      %1018 = vmatprep.subr.bf16.mxu0 0
      %1019 = vmatpush1.bf16.msra.mxu0 %v978
      %1020 = vmatprep.subr.bf16.mxu0 0
      %1021 = vmatpush2.bf16.msra.mxu0 0
      %1022 = vmatprep.subr.bf16.mxu0 0
      %1023 = vmatpush2.bf16.msra.mxu0 0
      %1024 = vmatprep.subr.bf16.mxu0 0
      %1025 = vmatpush2.bf16.msra.mxu0 0
      %1026 = vmatprep.subr.bf16.mxu0 0
      %1027 = vmatpush2.bf16.msra.mxu0 0
      %1028 = vmatprep.subr.bf16.mxu0 0
      %1029 = vmatpush2.bf16.msra.mxu0 0
      %1030 = vmatprep.subr.bf16.mxu0 0
      %1031 = vmatpush2.bf16.msra.mxu0 0
      %1032 = vmatprep.subr.bf16.mxu0 0
      %1033 = vmatpush2.bf16.msra.mxu0 0
      %1034 = vmatprep.subr.bf16.mxu0 0
      %1035 = vmatpush2.bf16.msra.mxu0 0
      %1036 = vmatprep.mubr.bf16.mxu0 0
      %1037 = vmatmul.mubr.bf16.gmra.mxu0 %v984
      %v1038 = vpop.f32.mrf.mxu0
      %v1039 = vadd.f32 0.0, %v1038
      %v1040 = vpop.f32.mrf.mxu0
      %v1041 = vpop.f32.mrf.mxu0
      %v1042 = vadd.f32 0.0, %v1041
      %v1043 = vpop.f32.mrf.mxu0
      %1044 = vmatprep.mubr.bf16.mxu0 0
      %1045 = vmatmul.mubr.bf16.gmra.mxu0 %v986
      %v1046 = vpop.f32.mrf.mxu0
      %v1047 = vadd.f32 0.0, %v1046
      %v1048 = vpop.f32.mrf.mxu0
      %v1049 = vpop.f32.mrf.mxu0
      %v1050 = vadd.f32 0.0, %v1049
      %v1051 = vpop.f32.mrf.mxu0
      %1052 = vmatprep.mubr.bf16.mxu0 0
      %1053 = vmatmul.mubr.bf16.gmra.mxu0 %v988
      %v1054 = vpop.f32.mrf.mxu0
      %v1055 = vadd.f32 0.0, %v1054
      %v1056 = vpop.f32.mrf.mxu0
      %v1057 = vpop.f32.mrf.mxu0
      %v1058 = vadd.f32 0.0, %v1057
      %v1059 = vpop.f32.mrf.mxu0
      %1060 = vmatprep.mubr.bf16.mxu0 0
      %1061 = vmatmul.mubr.bf16.gmra.mxu0 %v990
      %v1062 = vpop.f32.mrf.mxu0
      %v1063 = vadd.f32 0.0, %v1062
      %v1064 = vpop.f32.mrf.mxu0
      %v1065 = vpop.f32.mrf.mxu0
      %v1066 = vadd.f32 0.0, %v1065
      %v1067 = vpop.f32.mrf.mxu0
      %1068 = vmatprep.mubr.bf16.mxu0 0
      %1069 = vmatmul.mubr.bf16.gmra.mxu0 %v992
      %v1070 = vpop.f32.mrf.mxu0
      %v1071 = vadd.f32 0.0, %v1070
      %v1072 = vpop.f32.mrf.mxu0
      %v1073 = vpop.f32.mrf.mxu0
      %v1074 = vadd.f32 0.0, %v1073
      %v1075 = vpop.f32.mrf.mxu0
      %1076 = vmatprep.mubr.bf16.mxu0 0
      %1077 = vmatmul.mubr.bf16.gmra.mxu0 %v994
      %v1078 = vpop.f32.mrf.mxu0
      %v1079 = vadd.f32 0.0, %v1078
      %v1080 = vpop.f32.mrf.mxu0
      %v1081 = vpop.f32.mrf.mxu0
      %v1082 = vadd.f32 0.0, %v1081
      %v1083 = vpop.f32.mrf.mxu0
      %1084 = vmatprep.mubr.bf16.mxu0 0
      %1085 = vmatmul.mubr.bf16.gmra.mxu0 %v996
      %v1086 = vpop.f32.mrf.mxu0
      %v1087 = vadd.f32 0.0, %v1086
      %v1088 = vpop.f32.mrf.mxu0
      %v1089 = vpop.f32.mrf.mxu0
      %v1090 = vadd.f32 0.0, %v1089
      %v1091 = vpop.f32.mrf.mxu0
      %1092 = vmatprep.mubr.bf16.mxu0 0
      %1093 = vmatmul.mubr.bf16.gmra.mxu0 %v998
      %v1094 = vpop.f32.mrf.mxu0
      %v1095 = vadd.f32 0.0, %v1094
      %v1096 = vpop.f32.mrf.mxu0
      %v1097 = vpop.f32.mrf.mxu0
      %v1098 = vadd.f32 0.0, %v1097
      %v1099 = vpop.f32.mrf.mxu0
      %1100 = vdwg.mxu0
      %1101 = vst [vmem:[%s412] sm:$0xff] %v1039
      %1102 = vst [vmem:[%s412 + $0x8] sm:$0xff] %v1042
      %1103 = vst [vmem:[%s412 + $0x10] sm:$0xff] %v1047
      %1104 = vst [vmem:[%s412 + $0x18] sm:$0xff] %v1050
      %1105 = vst [vmem:[%s412 + $0x20] sm:$0xff] %v1055
      %1106 = vst [vmem:[%s412 + $0x28] sm:$0xff] %v1058
      %1107 = vst [vmem:[%s412 + $0x30] sm:$0xff] %v1063
      %1108 = vst [vmem:[%s412 + $0x38] sm:$0xff] %v1066
      %1109 = vst [vmem:[%s412 + $0x40] sm:$0xff] %v1071
      %1110 = vst [vmem:[%s412 + $0x48] sm:$0xff] %v1074
      %1111 = vst [vmem:[%s412 + $0x50] sm:$0xff] %v1079
      %1112 = vst [vmem:[%s412 + $0x58] sm:$0xff] %v1082
      %1113 = vst [vmem:[%s412 + $0x60] sm:$0xff] %v1087
      %1114 = vst [vmem:[%s412 + $0x68] sm:$0xff] %v1090
      %1115 = vst [vmem:[%s412 + $0x70] sm:$0xff] %v1095
      %1116 = vst [vmem:[%s412 + $0x78] sm:$0xff] %v1098
      %v1117 = vadd.f32 %v1039, %v1042
      %v1118 = vrot.slane %v1117, 4
      %v1119 = vadd.f32 %v1117, %v1118
      %v1120 = vrot.slane %v1119, 2
      %v1121 = vadd.f32 %v1119, %v1120
      %v1122 = vrot.slane %v1121, 1
      %v1123 = vadd.f32 %v1121, %v1122
      %v1124 = vadd.f32 %v1047, %v1050
      %v1125 = vrot.slane %v1124, 4
      %v1126 = vadd.f32 %v1124, %v1125
      %v1127 = vrot.slane %v1126, 2
      %v1128 = vadd.f32 %v1126, %v1127
      %v1129 = vrot.slane %v1128, 1
      %v1130 = vadd.f32 %v1128, %v1129
      %v1131 = vadd.f32 %v1055, %v1058
      %v1132 = vrot.slane %v1131, 4
      %v1133 = vadd.f32 %v1131, %v1132
      %v1134 = vrot.slane %v1133, 2
      %v1135 = vadd.f32 %v1133, %v1134
      %v1136 = vrot.slane %v1135, 1
      %v1137 = vadd.f32 %v1135, %v1136
      %v1138 = vadd.f32 %v1063, %v1066
      %v1139 = vrot.slane %v1138, 4
      %v1140 = vadd.f32 %v1138, %v1139
      %v1141 = vrot.slane %v1140, 2
      %v1142 = vadd.f32 %v1140, %v1141
      %v1143 = vrot.slane %v1142, 1
      %v1144 = vadd.f32 %v1142, %v1143
      %v1145 = vadd.f32 %v1071, %v1074
      %v1146 = vrot.slane %v1145, 4
      %v1147 = vadd.f32 %v1145, %v1146
      %v1148 = vrot.slane %v1147, 2
      %v1149 = vadd.f32 %v1147, %v1148
      %v1150 = vrot.slane %v1149, 1
      %v1151 = vadd.f32 %v1149, %v1150
      %v1152 = vadd.f32 %v1079, %v1082
      %v1153 = vrot.slane %v1152, 4
      %v1154 = vadd.f32 %v1152, %v1153
      %v1155 = vrot.slane %v1154, 2
      %v1156 = vadd.f32 %v1154, %v1155
      %v1157 = vrot.slane %v1156, 1
      %v1158 = vadd.f32 %v1156, %v1157
      %v1159 = vadd.f32 %v1087, %v1090
      %v1160 = vrot.slane %v1159, 4
      %v1161 = vadd.f32 %v1159, %v1160
      %v1162 = vrot.slane %v1161, 2
      %v1163 = vadd.f32 %v1161, %v1162
      %v1164 = vrot.slane %v1163, 1
      %v1165 = vadd.f32 %v1163, %v1164
      %v1166 = vadd.f32 %v1095, %v1098
      %v1167 = vrot.slane %v1166, 4
      %v1168 = vadd.f32 %v1166, %v1167
      %v1169 = vrot.slane %v1168, 2
      %v1170 = vadd.f32 %v1168, %v1169
      %v1171 = vrot.slane %v1170, 1
      %v1172 = vadd.f32 %v1170, %v1171
      %vm1181 = vcmask 1041409
      %v1182 = vsel %vm1181, %v1130, %v1123
      %vm1183 = vcmask 1042434
      %v1184 = vsel %vm1183, %v1137, %v1182
      %vm1185 = vcmask 1043459
      %v1186 = vsel %vm1185, %v1144, %v1184
      %vm1187 = vcmask 1044484
      %v1188 = vsel %vm1187, %v1151, %v1186
      %vm1189 = vcmask 1045509
      %v1190 = vsel %vm1189, %v1158, %v1188
      %vm1191 = vcmask 1046534
      %v1192 = vsel %vm1191, %v1165, %v1190
      %vm1193 = vcmask 1047559
      %v1194 = vsel %vm1193, %v1172, %v1192
      %1196 = vst [vmem:[%s424] sm:$0xff] %v1194
      %v1197 = vmul.f32 %v1039, %v1039
      %v1198 = vmul.f32 %v1042, %v1042
      %v1199 = vmul.f32 %v1047, %v1047
      %v1200 = vmul.f32 %v1050, %v1050
      %v1201 = vmul.f32 %v1055, %v1055
      %v1202 = vmul.f32 %v1058, %v1058
      %v1203 = vmul.f32 %v1063, %v1063
      %v1204 = vmul.f32 %v1066, %v1066
      %v1205 = vmul.f32 %v1071, %v1071
      %v1206 = vmul.f32 %v1074, %v1074
      %v1207 = vmul.f32 %v1079, %v1079
      %v1208 = vmul.f32 %v1082, %v1082
      %v1209 = vmul.f32 %v1087, %v1087
      %v1210 = vmul.f32 %v1090, %v1090
      %v1211 = vmul.f32 %v1095, %v1095
      %v1212 = vmul.f32 %v1098, %v1098
      %v1213 = vadd.f32 %v1197, %v1198
      %v1214 = vrot.slane %v1213, 4
      %v1215 = vadd.f32 %v1213, %v1214
      %v1216 = vrot.slane %v1215, 2
      %v1217 = vadd.f32 %v1215, %v1216
      %v1218 = vrot.slane %v1217, 1
      %v1219 = vadd.f32 %v1217, %v1218
      %v1220 = vadd.f32 %v1199, %v1200
      %v1221 = vrot.slane %v1220, 4
      %v1222 = vadd.f32 %v1220, %v1221
      %v1223 = vrot.slane %v1222, 2
      %v1224 = vadd.f32 %v1222, %v1223
      %v1225 = vrot.slane %v1224, 1
      %v1226 = vadd.f32 %v1224, %v1225
      %v1227 = vadd.f32 %v1201, %v1202
      %v1228 = vrot.slane %v1227, 4
      %v1229 = vadd.f32 %v1227, %v1228
      %v1230 = vrot.slane %v1229, 2
      %v1231 = vadd.f32 %v1229, %v1230
      %v1232 = vrot.slane %v1231, 1
      %v1233 = vadd.f32 %v1231, %v1232
      %v1234 = vadd.f32 %v1203, %v1204
      %v1235 = vrot.slane %v1234, 4
      %v1236 = vadd.f32 %v1234, %v1235
      %v1237 = vrot.slane %v1236, 2
      %v1238 = vadd.f32 %v1236, %v1237
      %v1239 = vrot.slane %v1238, 1
      %v1240 = vadd.f32 %v1238, %v1239
      %v1241 = vadd.f32 %v1205, %v1206
      %v1242 = vrot.slane %v1241, 4
      %v1243 = vadd.f32 %v1241, %v1242
      %v1244 = vrot.slane %v1243, 2
      %v1245 = vadd.f32 %v1243, %v1244
      %v1246 = vrot.slane %v1245, 1
      %v1247 = vadd.f32 %v1245, %v1246
      %v1248 = vadd.f32 %v1207, %v1208
      %v1249 = vrot.slane %v1248, 4
      %v1250 = vadd.f32 %v1248, %v1249
      %v1251 = vrot.slane %v1250, 2
      %v1252 = vadd.f32 %v1250, %v1251
      %v1253 = vrot.slane %v1252, 1
      %v1254 = vadd.f32 %v1252, %v1253
      %v1255 = vadd.f32 %v1209, %v1210
      %v1256 = vrot.slane %v1255, 4
      %v1257 = vadd.f32 %v1255, %v1256
      %v1258 = vrot.slane %v1257, 2
      %v1259 = vadd.f32 %v1257, %v1258
      %v1260 = vrot.slane %v1259, 1
      %v1261 = vadd.f32 %v1259, %v1260
      %v1262 = vadd.f32 %v1211, %v1212
      %v1263 = vrot.slane %v1262, 4
      %v1264 = vadd.f32 %v1262, %v1263
      %v1265 = vrot.slane %v1264, 2
      %v1266 = vadd.f32 %v1264, %v1265
      %v1267 = vrot.slane %v1266, 1
      %v1268 = vadd.f32 %v1266, %v1267
      %v1277 = vsel %vm1181, %v1226, %v1219
      %v1278 = vsel %vm1183, %v1233, %v1277
      %v1279 = vsel %vm1185, %v1240, %v1278
      %v1280 = vsel %vm1187, %v1247, %v1279
      %v1281 = vsel %vm1189, %v1254, %v1280
      %v1282 = vsel %vm1191, %v1261, %v1281
      %v1283 = vsel %vm1193, %v1268, %v1282
      %1285 = vst [vmem:[%s435] sm:$0xff] %v1283
      %s1286 = smul.u32 8, %s23
      %p1287 = scmp.lt.s32.totalorder %s22, 1
      %s1288 = scalar_select %p1287, %s22, 1
      %p1289 = scmp.lt.s32.totalorder %s1286, 15
      %s1290 = scalar_select %p1289, %s1286, 15
      %p1291 = scmp.lt.s32.totalorder %s24, 0
      %s1292 = scalar_select %p1291, %s24, 0
      %s1293 = smul.addr %s1290, 2
      %s1294 = sadd.s32 %s1292, %s1293
      %s1295 = smul.addr %s1288, 32
      %s1296 = sadd.s32 %s1294, %s1295
      %s1297 = smul.addr %s1296, 8
      %s1298 = scalar_lea.vmem %s3, %s1297
      %p1299 = scmp.lt.s32.totalorder %s22, 1
      %s1300 = scalar_select %p1299, %s22, 1
      %p1301 = scmp.lt.s32.totalorder %s23, 1
      %s1302 = scalar_select %p1301, %s23, 1
      %p1303 = scmp.lt.s32.totalorder %s24, 0
      %s1304 = scalar_select %p1303, %s24, 0
      %s1305 = sadd.s32 %s1304, %s1302
      %s1306 = smul.addr %s1300, 2
      %s1307 = sadd.s32 %s1305, %s1306
      %s1308 = smul.addr %s1307, 8
      %s1309 = scalar_lea.vmem %s4, %s1308
      %p1310 = scmp.lt.s32.totalorder %s22, 1
      %s1311 = scalar_select %p1310, %s22, 1
      %p1312 = scmp.lt.s32.totalorder %s23, 1
      %s1313 = scalar_select %p1312, %s23, 1
      %p1314 = scmp.lt.s32.totalorder %s24, 0
      %s1315 = scalar_select %p1314, %s24, 0
      %s1316 = sadd.s32 %s1315, %s1313
      %s1317 = smul.addr %s1311, 2
      %s1318 = sadd.s32 %s1316, %s1317
      %s1319 = smul.addr %s1318, 8
      %s1320 = scalar_lea.vmem %s5, %s1319
      // Predicated region
      $region33: #{conv2d_block.1} parent=31 // pred_check
        %p1321 = pneg %p144
      $region34: #{conv2d_block.1} parent=31 // pred_check_branch
        %1323 = sbr.rel (%p1321) target = $region36
      $region35: #{conv2d_block.1} parent=31 // pred_region
        %s1324 = smul.u32 8, %s23
      $region36: #{conv2d_block.1} parent=31 // pred_fallthru
        _
      // Predicated region
      $region37: #{conv2d_block.1} parent=31 // pred_check
        %p1325 = pneg %p174
      $region38: #{conv2d_block.1} parent=31 // pred_check_branch
        %1327 = sbr.rel (%p1325) target = $region40
      $region39: #{conv2d_block.1} parent=31 // pred_region
        _
      $region40: #{conv2d_block.1} parent=31 // pred_fallthru
        _
      // Predicated region
      $region41: #{conv2d_block.1} parent=31 // pred_check
        %p1328 = pneg %p204
      $region42: #{conv2d_block.1} parent=31 // pred_check_branch
        %1330 = sbr.rel (%p1328) target = $region44
      $region43: #{conv2d_block.1} parent=31 // pred_region
        _
      $region44: #{conv2d_block.1} parent=31 // pred_fallthru
        _
    $region32: #{conv2d_block.1} parent=5 // pred_fallthru
      _
    %p1331 = scmp.le.s32.totalorder 2, %s12
    // Predicated region
    $region45: #{conv2d_block.1} parent=5 // pred_check
      %p1332 = pneg %p1331
    $region46: #{conv2d_block.1} parent=5 // pred_check_branch
      %1334 = sbr.rel (%p1332) target = $region48
    $region47: #{conv2d_block.1} parent=5 // pred_region
      %s1335 = ssub.s32 %s12, 2
      // Predicated region
      $region49: #{conv2d_block.1} parent=47 // pred_check
        %p1336 = pneg %p150
      $region50: #{conv2d_block.1} parent=47 // pred_check_branch
        %1338 = sbr.rel (%p1336) target = $region52
      $region51: #{conv2d_block.1} parent=47 // pred_region
        %s1339 = smul.u32 8, %s26
        %p1340 = scmp.lt.s32.totalorder %s25, 1
        %s1341 = scalar_select %p1340, %s25, 1
        %p1342 = scmp.lt.s32.totalorder %s1339, 15
        %s1343 = scalar_select %p1342, %s1339, 15
        %p1344 = scmp.lt.s32.totalorder %s27, 0
        %s1345 = scalar_select %p1344, %s27, 0
        %s1346 = smul.addr %s1343, 2
        %s1347 = sadd.s32 %s1345, %s1346
        %s1348 = smul.addr %s1341, 32
        %s1349 = sadd.s32 %s1347, %s1348
        %s1350 = smul.addr %s1349, 8
        %s1351 = scalar_lea.vmem %s3, %s1350
      $region52: #{conv2d_block.1} parent=47 // pred_fallthru
        _
      // Predicated region
      $region53: #{conv2d_block.1} parent=47 // pred_check
        %p1352 = pneg %p180
      $region54: #{conv2d_block.1} parent=47 // pred_check_branch
        %1354 = sbr.rel (%p1352) target = $region56
      $region55: #{conv2d_block.1} parent=47 // pred_region
        %p1355 = scmp.lt.s32.totalorder %s25, 1
        %s1356 = scalar_select %p1355, %s25, 1
        %p1357 = scmp.lt.s32.totalorder %s26, 1
        %s1358 = scalar_select %p1357, %s26, 1
        %p1359 = scmp.lt.s32.totalorder %s27, 0
        %s1360 = scalar_select %p1359, %s27, 0
        %s1361 = sadd.s32 %s1360, %s1358
        %s1362 = smul.addr %s1356, 2
        %s1363 = sadd.s32 %s1361, %s1362
        %s1364 = smul.addr %s1363, 8
        %s1365 = scalar_lea.vmem %s4, %s1364
      $region56: #{conv2d_block.1} parent=47 // pred_fallthru
        _
      // Predicated region
      $region57: #{conv2d_block.1} parent=47 // pred_check
        %p1366 = pneg %p210
      $region58: #{conv2d_block.1} parent=47 // pred_check_branch
        %1368 = sbr.rel (%p1366) target = $region60
      $region59: #{conv2d_block.1} parent=47 // pred_region
        %p1369 = scmp.lt.s32.totalorder %s25, 1
        %s1370 = scalar_select %p1369, %s25, 1
        %p1371 = scmp.lt.s32.totalorder %s26, 1
        %s1372 = scalar_select %p1371, %s26, 1
        %p1373 = scmp.lt.s32.totalorder %s27, 0
        %s1374 = scalar_select %p1373, %s27, 0
        %s1375 = sadd.s32 %s1374, %s1372
        %s1376 = smul.addr %s1370, 2
        %s1377 = sadd.s32 %s1375, %s1376
        %s1378 = smul.addr %s1377, 8
        %s1379 = scalar_lea.vmem %s5, %s1378
      $region60: #{conv2d_block.1} parent=47 // pred_fallthru
        _
    $region48: #{conv2d_block.1} parent=5 // pred_fallthru
      _
  $region6: #{conv2d_block.1} parent=0 // loop_footer
    %s16 = sadd.s32 1, %s12
  $region7: #{conv2d_block.1} parent=0 // loop_footer_branch
    %11 = sbr.rel target = $region3
  $region8: #{conv2d_block.1} parent=0 // loop_exit
    _

</llo_original>
